<compile_context>
chip_gen: v7x
topology: tpu7x:2x2x1
jax: 0.10.0
libtpu: 0.0.40
codegen_flags: <defaults>
</compile_context>

<pallas_src>
import functools

import jax
import jax.numpy as jnp
from jax.experimental import pallas as pl
from jax.experimental.pallas import tpu as pltpu


def _locked_dropout_kernel(seed_ref, x_ref, o_ref, *, drop_threshold_24, scale):
    """seed_ref: (1,) int32 in SMEM; x_ref/o_ref: (1, T_TILE, H) tiles in VMEM."""
    H = x_ref.shape[-1]
    b = pl.program_id(0)          # batch index (block size 1 along B)
    seed = seed_ref[0]

    # Deterministic per-(seed, batch, hidden) random bits via an integer hash.
    # Recomputed identically for every T tile -> mask is locked over time.
    h_idx = jax.lax.broadcasted_iota(jnp.int32, (1, H), 1).astype(jnp.uint32)
    key = (h_idx * jnp.uint32(0x9E3779B9)
           ^ (seed.astype(jnp.uint32) * jnp.uint32(0x85EBCA6B))
           ^ (b.astype(jnp.uint32) * jnp.uint32(0xC2B2AE35)))

    # lowbias32 finalizer (good avalanche, cheap VPU-only ops).
    r = key ^ (key >> 16)
    r = r * jnp.uint32(0x7FEB352D)
    r = r ^ (r >> 15)
    r = r * jnp.uint32(0x846CA68B)
    r = r ^ (r >> 16)

    # Integer-space Bernoulli: drop iff top-24 random bits < p * 2^24.
    r24 = (r >> 8).astype(jnp.int32)                       # uniform over [0, 2^24)
    keep = r24 >= jnp.int32(drop_threshold_24)
    mask = jnp.where(keep, jnp.float32(scale), jnp.float32(0.0)).astype(x_ref.dtype)

    # (1, T_TILE, H) * (1, H) -> broadcast over the time axis.
    o_ref[...] = x_ref[...] * mask


def locked_dropout(x, *, p=0.3, seed=0, training=True,
                   target_tile_bytes=2 * 1024 * 1024):
    """x: [B, T, H] padded sequences. Dropout mask shared across the T axis."""
    if not training or p == 0.0:
        return x

    B, T, H = x.shape
    itemsize = jnp.dtype(x.dtype).itemsize

    # Tile the time axis: multiple of 8 sublanes, ~2 MiB per tile so
    # (in + out) double-buffering fits every generation's default scoped VMEM.
    t_tile = target_tile_bytes // max(1, H * itemsize)
    t_tile = max(8, (t_tile // 8) * 8)
    if t_tile >= T:
        t_tile = T                      # full-extent block is always legal
    num_t = pl.cdiv(T, t_tile)

    drop_threshold_24 = min(int(round(p * float(1 << 24))), (1 << 24) - 1)
    scale = 1.0 / (1.0 - p)

    kernel = functools.partial(
        _locked_dropout_kernel,
        drop_threshold_24=drop_threshold_24,
        scale=scale,
    )

    seed_arr = jnp.array([seed], dtype=jnp.int32)

    return pl.pallas_call(
        kernel,
        out_shape=jax.ShapeDtypeStruct((B, T, H), x.dtype),
        grid=(B, num_t),
        in_specs=[
            pl.BlockSpec(memory_space=pltpu.MemorySpace.SMEM),      # seed scalar
            pl.BlockSpec((1, t_tile, H), lambda b, t: (b, t, 0)),   # x tile
        ],
        out_specs=pl.BlockSpec((1, t_tile, H), lambda b, t: (b, t, 0)),
        compiler_params=pltpu.CompilerParams(
            dimension_semantics=("parallel", "parallel"),
        ),
    )(seed_arr, x)


if __name__ == "__main__":
    key = jax.random.PRNGKey(0)
    B, T, H = 2, 8, 128  # batch, padded seq len, rnn hidden size
    x = jax.random.normal(key, (B, T, H), dtype=jnp.float32)

    p = 0.3
    y = jax.block_until_ready(locked_dropout(x, p=p, seed=1234, training=True))

    scale = 1.0 / (1.0 - p)
    safe_x = jnp.where(jnp.abs(x) > 1e-6, x, 1.0)
    ratio = jnp.where(jnp.abs(x) > 1e-6, y / safe_x, 0.0)

    # Each element is either dropped (0) or scaled by exactly 1/(1-p).
    valid = jnp.logical_or(jnp.abs(ratio) < 1e-5, jnp.abs(ratio - scale) < 1e-3)
    assert bool(jnp.all(valid)), "mask values are not {0, 1/(1-p)}"

    # Mask is identical ("locked") across the sequence (time) axis.
    assert bool(jnp.all(jnp.abs(ratio - ratio[:, :1, :]) < 1e-3)), "mask not locked over T"

    # Different batch rows get different masks.
    assert bool(jnp.any(jnp.abs(ratio[0, 0, :] - ratio[1, 0, :]) > 1e-3)), \
        "batch rows share the same mask"

    # Drop rate is roughly p (very loose bound; 256 Bernoulli draws).
    dropped = jnp.mean((jnp.abs(ratio[:, 0, :]) < 1e-5).astype(jnp.float32))
    assert 0.05 < float(dropped) < 0.6, f"implausible drop rate {float(dropped)}"

    # Eval path returns the input unchanged.
    y_eval = jax.block_until_ready(locked_dropout(x, p=p, training=False))
    assert bool(jnp.all(y_eval == x))

    print("KERNEL_OK")
</pallas_src>

<mosaic_0001>
module attributes {stable_mosaic.version = 11 : i64} {
  func.func @_locked_dropout_kernel(%arg0: i32, %arg1: i32, %arg2: memref<1xi32, #tpu.memory_space<smem>>, %arg3: memref<1x8x128xf32, #tpu.memory_space<vmem>>, %arg4: memref<1x8x128xf32, #tpu.memory_space<vmem>>) attributes {dimension_semantics = [#tpu.dimension_semantics<parallel>, #tpu.dimension_semantics<parallel>], iteration_bounds = array<i64: 2, 1>, scalar_prefetch = 0 : i64, scratch_operands = 0 : i64, tpu.core_type = #tpu.core_type<tc>, window_params = [{transform_indices = @transform_0, window_bounds = array<i64: 1>}, {transform_indices = @transform_1, window_bounds = array<i64: 1, 8, 128>}, {transform_indices = @transform_2, window_bounds = array<i64: 1, 8, 128>}]} {
    %c0 = arith.constant 0 : index
    %0 = memref.load %arg2[%c0] : memref<1xi32, #tpu.memory_space<smem>>
    %1 = tpu.iota {dimensions = array<i32: 1>} : vector<1x128xi32>
    %c-1640531527_i32 = arith.constant -1640531527 : i32
    %2 = vector.broadcast %c-1640531527_i32 : i32 to vector<1x128xi32>
    %3 = arith.muli %1, %2 : vector<1x128xi32>
    %c-2048144789_i32 = arith.constant -2048144789 : i32
    %4 = arith.muli %0, %c-2048144789_i32 : i32
    %5 = vector.broadcast %4 : i32 to vector<1x128xi32>
    %6 = arith.xori %3, %5 : vector<1x128xi32>
    %c-1028477387_i32 = arith.constant -1028477387 : i32
    %7 = arith.muli %arg0, %c-1028477387_i32 : i32
    %8 = vector.broadcast %7 : i32 to vector<1x128xi32>
    %9 = arith.xori %6, %8 : vector<1x128xi32>
    %c16_i32 = arith.constant 16 : i32
    %10 = vector.broadcast %c16_i32 : i32 to vector<1x128xi32>
    %11 = arith.shrui %9, %10 : vector<1x128xi32>
    %12 = arith.xori %9, %11 : vector<1x128xi32>
    %c2146121005_i32 = arith.constant 2146121005 : i32
    %13 = vector.broadcast %c2146121005_i32 : i32 to vector<1x128xi32>
    %14 = arith.muli %12, %13 : vector<1x128xi32>
    %c15_i32 = arith.constant 15 : i32
    %15 = vector.broadcast %c15_i32 : i32 to vector<1x128xi32>
    %16 = arith.shrui %14, %15 : vector<1x128xi32>
    %17 = arith.xori %14, %16 : vector<1x128xi32>
    %c-2073254261_i32 = arith.constant -2073254261 : i32
    %18 = vector.broadcast %c-2073254261_i32 : i32 to vector<1x128xi32>
    %19 = arith.muli %17, %18 : vector<1x128xi32>
    %c16_i32_0 = arith.constant 16 : i32
    %20 = vector.broadcast %c16_i32_0 : i32 to vector<1x128xi32>
    %21 = arith.shrui %19, %20 : vector<1x128xi32>
    %22 = arith.xori %19, %21 : vector<1x128xi32>
    %c8_i32 = arith.constant 8 : i32
    %23 = vector.broadcast %c8_i32 : i32 to vector<1x128xi32>
    %24 = arith.shrui %22, %23 : vector<1x128xi32>
    %c5033165_i32 = arith.constant 5033165 : i32
    %25 = vector.broadcast %c5033165_i32 : i32 to vector<1x128xi32>
    %26 = arith.cmpi sge, %24, %25 : vector<1x128xi32>
    %cst = arith.constant 1.42857146 : f32
    %cst_1 = arith.constant 0.000000e+00 : f32
    %27 = vector.broadcast %cst : f32 to vector<1x128xf32>
    %28 = vector.broadcast %cst_1 : f32 to vector<1x128xf32>
    %29 = arith.select %26, %27, %28 : vector<1x128xi1>, vector<1x128xf32>
    %c0_2 = arith.constant 0 : index
    %c0_3 = arith.constant 0 : index
    %c0_4 = arith.constant 0 : index
    %30 = vector.load %arg3[%c0_2, %c0_3, %c0_4] : memref<1x8x128xf32, #tpu.memory_space<vmem>>, vector<1x8x128xf32>
    %31 = vector.shape_cast %29 : vector<1x128xf32> to vector<1x1x128xf32>
    %32 = vector.broadcast %31 : vector<1x1x128xf32> to vector<1x8x128xf32>
    %33 = arith.mulf %30, %32 : vector<1x8x128xf32>
    %c0_5 = arith.constant 0 : index
    %c0_6 = arith.constant 0 : index
    %c0_7 = arith.constant 0 : index
    %34 = vector.load %arg4[%c0_5, %c0_6, %c0_7] : memref<1x8x128xf32, #tpu.memory_space<vmem>>, vector<1x8x128xf32>
    tpu.vector_store %arg4[%c0_5, %c0_6, %c0_7], %33 {strides = array<i32>} : memref<1x8x128xf32, #tpu.memory_space<vmem>>, vector<1x8x128xf32>,
    return
  }
  func.func @transform_0(%arg0: i32, %arg1: i32) -> i32 {
    %c0_i32 = arith.constant 0 : i32
    %c0_i32_0 = arith.constant 0 : i32
    return %c0_i32 : i32
  }
  func.func @transform_1(%arg0: i32, %arg1: i32) -> (i32, i32, i32) {
    %c0_i32 = arith.constant 0 : i32
    %c0_i32_0 = arith.constant 0 : i32
    return %arg0, %arg1, %c0_i32 : i32, i32, i32
  }
  func.func @transform_2(%arg0: i32, %arg1: i32) -> (i32, i32, i32) {
    %c0_i32 = arith.constant 0 : i32
    %c0_i32_0 = arith.constant 0 : i32
    return %arg0, %arg1, %c0_i32 : i32, i32, i32
  }
}

</mosaic_0001>

<llo_original>
// kernel: tpu_custom_call.1
$region0: #{tpu_custom_call.1}
  #allocation0 [shape = 'u32[]', space=smem, size = 0x4, offset = 0x4, fixed_abs, tag = 'smem constant byte address 0x4 - core index']
  #allocation1 [shape = 'u32[144,128]{1,0:T(1,128)}', space=vmem, size = 0x12000, scoped, tag = 'internal scratch']
  #allocation2 [shape = 's32[1]{0:T(128)S(6)}', space=smem, size = 0x200, scoped, tag = 'scoped memory for tpu_custom_call.1']
  %s0 = inlined_call_operand.<no memory space> [shape: s32[1], index: 0, kind: input, shape index: {}]
  %s1 = inlined_call_operand.hbm [shape: f32[2,8,128], index: 1, kind: input, shape index: {}]
  %s2 = inlined_call_operand.hbm [shape: f32[2,8,128], index: 2, kind: output, shape index: {}]
  %s3 = sld [smem:[#allocation0]]
  $region45: #{tpu_custom_call.1} parent=0
    _
  %s5 = ssub.s32 1, %s3
  %s6 = scalar_select 0, %s5, %s3
  %7 = sst [smem:[#allocation2]] %s0
  $region1: #{tpu_custom_call.1} parent=0
    #allocation3 [shape = 'u8[8192]{0}', space=vmem, size = 0x2000, scoped, tag = 'input window, operand 1']
    #allocation4 [shape = 's32[2]{0}', space=sflag, size = 0x8, scoped, tag = 'scoped memory for tpu_custom_call.1']
    #allocation5 [shape = 's32[2]{0}', space=sflag, size = 0x8, scoped, tag = 'scoped memory for tpu_custom_call.1']
    #allocation6 [shape = 'u8[8192]{0}', space=vmem, size = 0x2000, scoped, tag = 'output window, operand 0']
    %8 = vsyncpa [#allocation4], 0
    %s9 = scalar_lea.sflag [#allocation4], 1
    %10 = vsyncpa %s9, 0
    %11 = vsyncpa [#allocation5], 0
    %s12 = scalar_lea.sflag [#allocation5], 1
    %13 = vsyncpa %s12, 0
    loop: start=0, step=1, limit=4
    $region2: #{tpu_custom_call.1} parent=1 // loop_pre_header
      _
    $region3: #{tpu_custom_call.1} parent=1 // loop_header
      %s15 = sphi 0, %s19
      %p16 = scmp.ge.s32.totalorder %s15, 4
      %s22 = sphi 0, %s34
      %s23 = sphi 0, %s30
      %s24 = sphi 0, %s22
      %s25 = sphi 0, %s23
      %s26 = sphi 0, %s24
      %s27 = sphi 0, %s25
      %s35 = sphi 0, %s35
      %s37 = sphi 0, %s35
      %s38 = sphi 0, %s37
      %s52 = sphi 0, %s38
      %s60 = sphi 0, %s62
      %s63 = sphi 0, %s60
      %s64 = sphi 0, %s63
      %s80 = sphi 0, %s64
      %s88 = sphi 0, %s90
      %s91 = sphi 0, %s88
      %s92 = sphi 0, %s91
      %s108 = sphi 0, %s92
    $region4: #{tpu_custom_call.1} parent=1 // loop_header_branch
      %18 = sbr.rel (%p16) target = $region8
    $region5: #{tpu_custom_call.1} parent=1 // loop_body
      %s20 = ssub.s32 %s15, 1
      %s21 = ssub.s32 %s15, 2
      %s28 = sadd.s32 1, %s23
      %p29 = scmp.ge.s32.totalorder %s28, 1
      %s30 = scalar_select %p29, 0, %s28
      %s31 = sadd.s32 1, %s22
      %s32 = scalar_select %p29, %s31, %s22
      %p33 = scmp.ge.s32.totalorder %s32, 2
      %s34 = scalar_select %p33, 0, %s32
      %s36 = sadd.s32 %s35, 1
      %p39 = scmp.eq.s32.totalorder %s15, 1
      %p40 = scmp.ne.s32.totalorder %s35, %s37
      %p41 = scmp.eq.s32.totalorder %s15, 0
      %p42 = por %p40, %p41
      %p43 = scmp.ne.s32.totalorder %s35, %s37
      %p44 = scmp.eq.s32.totalorder %s20, 1
      %p45 = por %p43, %p44
      %p46 = scmp.ne.s32.totalorder %s37, %s38
      %p47 = scmp.eq.s32.totalorder %s20, 0
      %p48 = por %p46, %p47
      %p49 = scmp.ne.s32.totalorder %s37, %s38
      %p50 = scmp.eq.s32.totalorder %s21, 1
      %p51 = por %p49, %p50
      %p53 = scmp.ne.s32.totalorder %s38, %s52
      %p54 = scmp.eq.s32.totalorder %s21, 0
      %p55 = por %p53, %p54
      %s56 = ssub.s32 %s22, %s34
      %s57 = ssub.s32 %s23, %s30
      %s58 = sor.u32 %s56, %s57
      %p59 = scmp.eq.s32.totalorder %s58, 0
      %s61 = sadd.s32 %s60, 1
      %s62 = scalar_select %p59, %s60, %s61
      %p65 = pneg %p59
      %p66 = scmp.eq.s32.totalorder %s15, 1
      %p67 = por %p65, %p66
      %p68 = scmp.ne.s32.totalorder %s60, %s63
      %p69 = scmp.eq.s32.totalorder %s15, 0
      %p70 = por %p68, %p69
      %p71 = scmp.ne.s32.totalorder %s60, %s63
      %p72 = scmp.eq.s32.totalorder %s20, 1
      %p73 = por %p71, %p72
      %p74 = scmp.ne.s32.totalorder %s63, %s64
      %p75 = scmp.eq.s32.totalorder %s20, 0
      %p76 = por %p74, %p75
      %p77 = scmp.ne.s32.totalorder %s63, %s64
      %p78 = scmp.eq.s32.totalorder %s21, 1
      %p79 = por %p77, %p78
      %p81 = scmp.ne.s32.totalorder %s64, %s80
      %p82 = scmp.eq.s32.totalorder %s21, 0
      %p83 = por %p81, %p82
      %s84 = ssub.s32 %s22, %s34
      %s85 = ssub.s32 %s23, %s30
      %s86 = sor.u32 %s84, %s85
      %p87 = scmp.eq.s32.totalorder %s86, 0
      %s89 = sadd.s32 %s88, 1
      %s90 = scalar_select %p87, %s88, %s89
      %p93 = pneg %p87
      %p94 = scmp.eq.s32.totalorder %s15, 1
      %p95 = por %p93, %p94
      %p96 = scmp.ne.s32.totalorder %s88, %s91
      %p97 = scmp.eq.s32.totalorder %s15, 0
      %p98 = por %p96, %p97
      %p99 = scmp.ne.s32.totalorder %s88, %s91
      %p100 = scmp.eq.s32.totalorder %s20, 1
      %p101 = por %p99, %p100
      %p102 = scmp.ne.s32.totalorder %s91, %s92
      %p103 = scmp.eq.s32.totalorder %s20, 0
      %p104 = por %p102, %p103
      %p105 = scmp.ne.s32.totalorder %s91, %s92
      %p106 = scmp.eq.s32.totalorder %s21, 1
      %p107 = por %p105, %p106
      %p109 = scmp.ne.s32.totalorder %s92, %s108
      %p110 = scmp.eq.s32.totalorder %s21, 0
      %p111 = por %p109, %p110
      %p112 = scmp.le.s32.totalorder 1, %s15
      %p113 = scmp.lt.s32.totalorder %s15, 3
      %p114 = pnand %p112, %p113
      %p115 = pneg %p114
      // Predicated region
      $region9: #{tpu_custom_call.1} parent=5 // pred_check
        _
      $region10: #{tpu_custom_call.1} parent=5 // pred_check_branch
        %117 = sbr.rel (%p114) target = $region12
      $region11: #{tpu_custom_call.1} parent=5 // pred_region
        %s118 = ssub.s32 %s15, 1
        // Predicated region
        $region13: #{tpu_custom_call.1} parent=11 // pred_check
          %p119 = pneg %p48
        $region14: #{tpu_custom_call.1} parent=11 // pred_check_branch
          %121 = sbr.rel (%p119) target = $region16
        $region15: #{tpu_custom_call.1} parent=11 // pred_region
          _
        $region16: #{tpu_custom_call.1} parent=11 // pred_fallthru
          _
      $region12: #{tpu_custom_call.1} parent=5 // pred_fallthru
        _
      %p122 = scmp.lt.s32.totalorder %s15, 2
      // Predicated region
      $region17: #{tpu_custom_call.1} parent=5 // pred_check
        %p123 = pneg %p122
      $region18: #{tpu_custom_call.1} parent=5 // pred_check_branch
        %125 = sbr.rel (%p123) target = $region20
      $region19: #{tpu_custom_call.1} parent=5 // pred_region
        // Predicated region
        $region21: #{tpu_custom_call.1} parent=19 // pred_check
          %p126 = pneg %p70
        $region22: #{tpu_custom_call.1} parent=19 // pred_check_branch
          %128 = sbr.rel (%p126) target = $region24
        $region23: #{tpu_custom_call.1} parent=19 // pred_region
          %s129 = sand.u32 %s60, 1
          %s130 = scalar_lea.sflag [#allocation4], %s129
          %s131 = sand.u32 %s60, 1
          %s132 = smul.addr %s131, 8
          %s133 = scalar_lea.vmem [#allocation3], %s132
          %s135 = ssub.s32 128, 128
          %136 = vsyncadd %s130, %s135
          %s137 = sadd.s32 %s23, %s22
          %s138 = smul.addr %s137, 128
          %s139 = scalar_lea.hbm %s1, %s138
          %s141 = sshll.u32 %s133, 4
          %s142 = int_to_ptr.vmem [resolvable:$true] %s141
          %144 = dma.hbm_to_vmem [thread:$0]  %s139, 128, %s142, %s130
        $region24: #{tpu_custom_call.1} parent=19 // pred_fallthru
          _
      $region20: #{tpu_custom_call.1} parent=5 // pred_fallthru
        _
      %p145 = scmp.le.s32.totalorder 1, %s15
      %p146 = scmp.lt.s32.totalorder %s15, 3
      %p147 = pnand %p145, %p146
      %p148 = pneg %p147
      // Predicated region
      $region25: #{tpu_custom_call.1} parent=5 // pred_check
        _
      $region26: #{tpu_custom_call.1} parent=5 // pred_check_branch
        %150 = sbr.rel (%p147) target = $region28
      $region27: #{tpu_custom_call.1} parent=5 // pred_region
        %s151 = ssub.s32 %s15, 1
        %s152 = sand.u32 %s63, 1
        %s153 = scalar_lea.sflag [#allocation4], %s152
        %s154 = sand.u32 %s63, 1
        %s155 = smul.addr %s154, 8
        %s156 = scalar_lea.vmem [#allocation3], %s155
        // Predicated region
        $region29: #{tpu_custom_call.1} parent=27 // pred_check
          %p157 = pneg %p76
        $region30: #{tpu_custom_call.1} parent=27 // pred_check_branch
          %159 = sbr.rel (%p157) target = $region32
        $region31: #{tpu_custom_call.1} parent=27 // pred_region
          %160 = dma.done %s153, 128
        $region32: #{tpu_custom_call.1} parent=27 // pred_fallthru
          _
        %p161 = pneg %p48
        %p162 = pneg %p45
        %s163 = sand.u32 %s63, 1
        %s164 = scalar_lea.sflag [#allocation4], %s163
        %s165 = sand.u32 %s63, 1
        %s166 = smul.addr %s165, 8
        %s167 = scalar_lea.vmem [#allocation3], %s166
        %p168 = pneg %p76
        %p169 = pneg %p73
        %p170 = pneg %p104
        %p171 = pneg %p101
        %s172 = sand.u32 %s91, 1
        %s173 = scalar_lea.sflag [#allocation5], %s172
        %s174 = sand.u32 %s91, 1
        %s175 = smul.addr %s174, 8
        %s176 = scalar_lea.vmem [#allocation6], %s175
        %s177 = sld [smem:[#allocation2]]
        %v178 = vlaneseq
        %v179 = vand.u32 %v178, 127
        %v180 = vmul.u32 %v179, 2654435769
        %s181 = smul.u32 %s177, 2246822507
        %v182 = vstv %s181
        %v183 = vxor.u32 %v180, %v182
        %s184 = smul.u32 %s24, 3266489909
        %v185 = vstv %s184
        %v186 = vxor.u32 %v183, %v185
        %v187 = vshrl.u32 %v186, 16
        %v188 = vxor.u32 %v186, %v187
        %v189 = vmul.u32 %v188, 2146121005
        %v190 = vshrl.u32 %v189, 15
        %v191 = vxor.u32 %v189, %v190
        %v192 = vmul.u32 %v191, 2221713035
        %v193 = vshrl.u32 %v192, 16
        %v194 = vxor.u32 %v192, %v193
        %v195 = vshrl.u32 %v194, 8
        %vm196 = vcmp.ge.s32.totalorder %v195, 5033165
        %v197 = vsel %vm196, 1.4285715, 0.0
        %v198 = vld [vmem:[%s156] sm:$0xff]
        %v199 = vmul.f32 %v198, %v197
        %200 = vst [vmem:[%s176] sm:$0xff] %v199
        %s201 = sand.u32 %s91, 1
        %s202 = scalar_lea.sflag [#allocation5], %s201
        %s203 = sand.u32 %s91, 1
        %s204 = smul.addr %s203, 8
        %s205 = scalar_lea.vmem [#allocation6], %s204
        // Predicated region
        $region33: #{tpu_custom_call.1} parent=27 // pred_check
          %p206 = pneg %p101
        $region34: #{tpu_custom_call.1} parent=27 // pred_check_branch
          %208 = sbr.rel (%p206) target = $region36
        $region35: #{tpu_custom_call.1} parent=27 // pred_region
          %s210 = ssub.s32 128, 128
          %211 = vsyncadd %s202, %s210
          %s212 = sadd.s32 %s25, %s24
          %s213 = smul.addr %s212, 128
          %s214 = scalar_lea.hbm %s2, %s213
          %s216 = sshll.u32 %s205, 4
          %s217 = int_to_ptr.vmem [resolvable:$true] %s216
          %219 = dma.vmem_to_hbm [thread:$0]  %s217, 128, %s214, %s202
        $region36: #{tpu_custom_call.1} parent=27 // pred_fallthru
          _
      $region28: #{tpu_custom_call.1} parent=5 // pred_fallthru
        _
      %p220 = scmp.le.s32.totalorder 2, %s15
      // Predicated region
      $region37: #{tpu_custom_call.1} parent=5 // pred_check
        %p221 = pneg %p220
      $region38: #{tpu_custom_call.1} parent=5 // pred_check_branch
        %223 = sbr.rel (%p221) target = $region40
      $region39: #{tpu_custom_call.1} parent=5 // pred_region
        %s224 = ssub.s32 %s15, 2
        // Predicated region
        $region41: #{tpu_custom_call.1} parent=39 // pred_check
          %p225 = pneg %p107
        $region42: #{tpu_custom_call.1} parent=39 // pred_check_branch
          %227 = sbr.rel (%p225) target = $region44
        $region43: #{tpu_custom_call.1} parent=39 // pred_region
          %s228 = sand.u32 %s92, 1
          %s229 = scalar_lea.sflag [#allocation5], %s228
          %s230 = sand.u32 %s92, 1
          %s231 = smul.addr %s230, 8
          %s232 = scalar_lea.vmem [#allocation6], %s231
          %233 = dma.done %s229, 128
        $region44: #{tpu_custom_call.1} parent=39 // pred_fallthru
          _
      $region40: #{tpu_custom_call.1} parent=5 // pred_fallthru
        _
    $region6: #{tpu_custom_call.1} parent=1 // loop_footer
      %s19 = sadd.s32 1, %s15
    $region7: #{tpu_custom_call.1} parent=1 // loop_footer_branch
      %14 = sbr.rel target = $region3
    $region8: #{tpu_custom_call.1} parent=1 // loop_exit
      _
    %234 = vsyncpa [#allocation4], 1
    %s235 = scalar_lea.sflag [#allocation4], 1
    %236 = vsyncpa %s235, 1
    %237 = vsyncpa [#allocation5], 1
    %s238 = scalar_lea.sflag [#allocation5], 1
    %239 = vsyncpa %s238, 1

</llo_original>
